<compile_context>
chip_gen: v5e
topology: v5e:2x2
jax: 0.10.0
libtpu: 0.0.40
codegen_flags: <defaults>
</compile_context>

<pallas_src>
import functools

import jax
import jax.numpy as jnp
from jax import lax
from jax.experimental import pallas as pl
from jax.experimental.pallas import tpu as pltpu


def _upsample_kernel(x_ref, w_ref, b_ref, o_ref, *, C, H, W, K, scale):
    """Conv2d(C -> scale, KxK, same padding) fused with pixel_shuffle.

    x_ref: (1, C, H, W)       one batch element, f32
    w_ref: (C*K*K, scale*W)   weights vectorized over the lane axis:
                              row t = (c*K+kh)*K+kw, lane j = oc*W + w carries
                              weight[oc, c, kh, kw]; column-halo taps are 0.
    b_ref: (1, scale*W)       bias vectorized the same way (lane j -> bias[j//W]).
    o_ref: (1, H, scale*W)    conv output already in pixel-shuffled layout:
                              o[0, h, oc*W + w] == conv[oc, h, w].
    """
    p = (K - 1) // 2
    SW = scale * W

    acc = jnp.zeros((H, SW), dtype=jnp.float32)

    # TODO(synk): for large C switch this Python unroll to lax.fori_loop over
    # channels with a dynamic slice of w_ref (keeps vreg pressure bounded).
    for c in range(C):
        xc = x_ref[0, c]                                        # (H, W)
        # Pack the `scale` output channels along lanes: lane j = oc*W + w sees
        # x[h, w] for every oc, so one window serves all output channels.
        slab = jnp.concatenate([xc] * scale, axis=1)            # (H, SW)
        # Build the conv halo in-register (replaces the HBM jnp.pad round trip).
        if p > 0:
            zrow = jnp.zeros((p, SW), dtype=jnp.float32)
            slab = jnp.concatenate([zrow, slab, zrow], axis=0)  # (H+2p, SW)
            zcol = jnp.zeros((H + 2 * p, p), dtype=jnp.float32)
            slab = jnp.concatenate([zcol, slab, zcol], axis=1)  # (H+2p, SW+2p)
        for kh in range(K):
            for kw in range(K):
                # One shifted window per tap, shared by *all* output channels;
                # the per-oc weights live along the lane axis of w_ref (the
                # out-of-range column taps were zeroed host-side, and the row
                # halo is genuine zeros, so no in-kernel masking is needed).
                xk = slab[kh:kh + H, kw:kw + SW]                # (H, SW)
                t = (c * K + kh) * K + kw
                acc = acc + w_ref[t:t + 1, :] * xk              # VPU MAC, all oc at once

    o_ref[0] = (acc + b_ref[...]).astype(o_ref.dtype)


def upsample_forward(x, weight, bias, *, scale, kernel_size):
    """x: (N, C, H, W) f32 -> (N, 1, H*scale, W), matching the PyTorch module."""
    N, C, H, W = x.shape
    K = kernel_size
    p = (K - 1) // 2
    SW = scale * W

    # ---- tiny host-side precompute: vectorize weights / bias over lanes ----
    lane = jnp.arange(SW)
    oc_of_lane = lane // W                       # which output channel a lane holds
    w_of_lane = lane % W                         # spatial column within that channel
    # (scale, C, K, K) -> (C*K*K, scale), tap rows ordered (c, kh, kw)
    wt = jnp.transpose(weight.astype(jnp.float32), (1, 2, 3, 0)).reshape(C * K * K, scale)
    wrows = wt[:, oc_of_lane]                    # (C*K*K, scale*W)
    # Zero the column-halo taps (w + kw - p outside [0, W)) directly in the weights.
    dw = jnp.arange(K) - p                       # per-kw column offset
    col_ok = ((w_of_lane[None, :] + dw[:, None]) >= 0) & \
             ((w_of_lane[None, :] + dw[:, None]) < W)            # (K, SW), kw-major
    wrows = wrows * jnp.tile(col_ok, (C * K, 1)).astype(jnp.float32)
    brow = bias.astype(jnp.float32)[oc_of_lane][None, :]         # (1, SW)

    kernel = functools.partial(_upsample_kernel, C=C, H=H, W=W, K=K, scale=scale)

    # TODO(synk): for large images add a row-tile grid axis (with an explicit
    # halo) and set vmem_limit_bytes so blocks fit v7x's 64 MiB VMEM; bf16
    # activations (f32 accum) would further help v6e/v7x but not v5e.
    out = pl.pallas_call(
        kernel,
        out_shape=jax.ShapeDtypeStruct((N, H, SW), jnp.float32),
        grid=(N,),
        in_specs=[
            pl.BlockSpec((1, C, H, W), lambda n: (n, 0, 0, 0)),
            pl.BlockSpec((C * K * K, SW), lambda n: (0, 0)),
            pl.BlockSpec((1, SW), lambda n: (0, 0)),
        ],
        out_specs=pl.BlockSpec((1, H, SW), lambda n: (n, 0, 0)),
        compiler_params=pltpu.CompilerParams(dimension_semantics=("parallel",)),
    )(x.astype(jnp.float32), wrows, brow)

    # pixel_shuffle is already fused into the kernel's output layout:
    # (N, H, scale*W) in row-major order is bit-identical to (N, 1, H*scale, W).
    return out.reshape(N, 1, H * scale, W)


def _reference(x, weight, bias, *, scale, kernel_size):
    p = (kernel_size - 1) // 2
    N, C, H, W = x.shape
    conv = lax.conv_general_dilated(
        x, weight, window_strides=(1, 1), padding=[(p, p), (p, p)],
        dimension_numbers=("NCHW", "OIHW", "NCHW"),
        precision=lax.Precision.HIGHEST) + bias.reshape(1, -1, 1, 1)
    out = conv.reshape(N, 1, scale, H, W)
    out = jnp.transpose(out, (0, 1, 3, 2, 4))
    return out.reshape(N, 1, H * scale, W)


if __name__ == "__main__":
    N, C, H, W = 2, 4, 16, 16
    scale, K = 2, 3

    key = jax.random.PRNGKey(0)
    k_x, k_w, k_b = jax.random.split(key, 3)

    x = jax.random.normal(k_x, (N, C, H, W), dtype=jnp.float32)

    # Deterministic Conv2d(num_channels=C, out=scale, kernel_size=K) parameters
    # (same shapes as the PyTorch module; synthetic init, no checkpoint load).
    fan_in = C * K * K
    bound = 1.0 / (fan_in ** 0.5)
    weight = jax.random.uniform(k_w, (scale, C, K, K), dtype=jnp.float32,
                                minval=-bound, maxval=bound)
    bias = jax.random.uniform(k_b, (scale,), dtype=jnp.float32,
                              minval=-bound, maxval=bound)

    out = upsample_forward(x, weight, bias, scale=scale, kernel_size=K)
    out = jax.block_until_ready(out)
    assert out.shape == (N, 1, H * scale, W), out.shape

    ref = jax.block_until_ready(
        _reference(x, weight, bias, scale=scale, kernel_size=K))
    assert jnp.allclose(out, ref, atol=1e-4, rtol=1e-4), \
        float(jnp.max(jnp.abs(out - ref)))

    print("KERNEL_OK")
</pallas_src>

<mosaic_0001>
module attributes {stable_mosaic.version = 11 : i64} {
  func.func @_upsample_kernel(%arg0: i32, %arg1: memref<1x4x16x16xf32, #tpu.memory_space<vmem>>, %arg2: memref<36x32xf32, #tpu.memory_space<vmem>>, %arg3: memref<1x32xf32, #tpu.memory_space<vmem>>, %arg4: memref<1x16x32xf32, #tpu.memory_space<vmem>>) attributes {dimension_semantics = [#tpu.dimension_semantics<parallel>], iteration_bounds = array<i64: 2>, scalar_prefetch = 0 : i64, scratch_operands = 0 : i64, tpu.core_type = #tpu.core_type<tc>, window_params = [{transform_indices = @transform_0, window_bounds = array<i64: 1, 4, 16, 16>}, {pipeline_mode = #tpu.pipeline_mode<synchronous>, transform_indices = @transform_1, window_bounds = array<i64: 36, 32>}, {pipeline_mode = #tpu.pipeline_mode<synchronous>, transform_indices = @transform_2, window_bounds = array<i64: 1, 32>}, {transform_indices = @transform_3, window_bounds = array<i64: 1, 16, 32>}]} {
    %cst = arith.constant 0.000000e+00 : f32
    %0 = vector.broadcast %cst : f32 to vector<16x32xf32>
    %c0 = arith.constant 0 : index
    %c0_0 = arith.constant 0 : index
    %c0_1 = arith.constant 0 : index
    %c0_2 = arith.constant 0 : index
    %1 = vector.load %arg1[%c0, %c0_0, %c0_1, %c0_2] : memref<1x4x16x16xf32, #tpu.memory_space<vmem>>, vector<1x1x16x16xf32>
    %2 = vector.shape_cast %1 : vector<1x1x16x16xf32> to vector<16x16xf32>
    %3 = tpu.concatenate %2, %2 in 1 : vector<16x16xf32>, vector<16x16xf32> -> vector<16x32xf32>
    %cst_3 = arith.constant 0.000000e+00 : f32
    %4 = vector.broadcast %cst_3 : f32 to vector<1x32xf32>
    %5 = tpu.concatenate %4, %3, %4 in 0 : vector<1x32xf32>, vector<16x32xf32>, vector<1x32xf32> -> vector<18x32xf32>
    %cst_4 = arith.constant 0.000000e+00 : f32
    %6 = vector.broadcast %cst_4 : f32 to vector<18x1xf32>
    %7 = tpu.concatenate %6, %5, %6 in 1 : vector<18x1xf32>, vector<18x32xf32>, vector<18x1xf32> -> vector<18x34xf32>
    %8 = vector.extract_strided_slice %7 {offsets = [0, 0], sizes = [16, 32], strides = [1, 1]} : vector<18x34xf32> to vector<16x32xf32>
    %c0_5 = arith.constant 0 : index
    %c0_6 = arith.constant 0 : index
    %9 = vector.load %arg2[%c0_5, %c0_6] : memref<36x32xf32, #tpu.memory_space<vmem>>, vector<1x32xf32>
    %10 = vector.broadcast %9 : vector<1x32xf32> to vector<16x32xf32>
    %11 = arith.mulf %10, %8 : vector<16x32xf32>
    %12 = arith.addf %0, %11 : vector<16x32xf32>
    %13 = vector.extract_strided_slice %7 {offsets = [0, 1], sizes = [16, 32], strides = [1, 1]} : vector<18x34xf32> to vector<16x32xf32>
    %c1 = arith.constant 1 : index
    %c0_7 = arith.constant 0 : index
    %14 = vector.load %arg2[%c1, %c0_7] : memref<36x32xf32, #tpu.memory_space<vmem>>, vector<1x32xf32>
    %15 = vector.broadcast %14 : vector<1x32xf32> to vector<16x32xf32>
    %16 = arith.mulf %15, %13 : vector<16x32xf32>
    %17 = arith.addf %12, %16 : vector<16x32xf32>
    %18 = vector.extract_strided_slice %7 {offsets = [0, 2], sizes = [16, 32], strides = [1, 1]} : vector<18x34xf32> to vector<16x32xf32>
    %c2 = arith.constant 2 : index
    %c0_8 = arith.constant 0 : index
    %19 = vector.load %arg2[%c2, %c0_8] : memref<36x32xf32, #tpu.memory_space<vmem>>, vector<1x32xf32>
    %20 = vector.broadcast %19 : vector<1x32xf32> to vector<16x32xf32>
    %21 = arith.mulf %20, %18 : vector<16x32xf32>
    %22 = arith.addf %17, %21 : vector<16x32xf32>
    %23 = vector.extract_strided_slice %7 {offsets = [1, 0], sizes = [16, 32], strides = [1, 1]} : vector<18x34xf32> to vector<16x32xf32>
    %c3 = arith.constant 3 : index
    %c0_9 = arith.constant 0 : index
    %24 = vector.load %arg2[%c3, %c0_9] : memref<36x32xf32, #tpu.memory_space<vmem>>, vector<1x32xf32>
    %25 = vector.broadcast %24 : vector<1x32xf32> to vector<16x32xf32>
    %26 = arith.mulf %25, %23 : vector<16x32xf32>
    %27 = arith.addf %22, %26 : vector<16x32xf32>
    %28 = vector.extract_strided_slice %7 {offsets = [1, 1], sizes = [16, 32], strides = [1, 1]} : vector<18x34xf32> to vector<16x32xf32>
    %c4 = arith.constant 4 : index
    %c0_10 = arith.constant 0 : index
    %29 = vector.load %arg2[%c4, %c0_10] : memref<36x32xf32, #tpu.memory_space<vmem>>, vector<1x32xf32>
    %30 = vector.broadcast %29 : vector<1x32xf32> to vector<16x32xf32>
    %31 = arith.mulf %30, %28 : vector<16x32xf32>
    %32 = arith.addf %27, %31 : vector<16x32xf32>
    %33 = vector.extract_strided_slice %7 {offsets = [1, 2], sizes = [16, 32], strides = [1, 1]} : vector<18x34xf32> to vector<16x32xf32>
    %c5 = arith.constant 5 : index
    %c0_11 = arith.constant 0 : index
    %34 = vector.load %arg2[%c5, %c0_11] : memref<36x32xf32, #tpu.memory_space<vmem>>, vector<1x32xf32>
    %35 = vector.broadcast %34 : vector<1x32xf32> to vector<16x32xf32>
    %36 = arith.mulf %35, %33 : vector<16x32xf32>
    %37 = arith.addf %32, %36 : vector<16x32xf32>
    %38 = vector.extract_strided_slice %7 {offsets = [2, 0], sizes = [16, 32], strides = [1, 1]} : vector<18x34xf32> to vector<16x32xf32>
    %c6 = arith.constant 6 : index
    %c0_12 = arith.constant 0 : index
    %39 = vector.load %arg2[%c6, %c0_12] : memref<36x32xf32, #tpu.memory_space<vmem>>, vector<1x32xf32>
    %40 = vector.broadcast %39 : vector<1x32xf32> to vector<16x32xf32>
    %41 = arith.mulf %40, %38 : vector<16x32xf32>
    %42 = arith.addf %37, %41 : vector<16x32xf32>
    %43 = vector.extract_strided_slice %7 {offsets = [2, 1], sizes = [16, 32], strides = [1, 1]} : vector<18x34xf32> to vector<16x32xf32>
    %c7 = arith.constant 7 : index
    %c0_13 = arith.constant 0 : index
    %44 = vector.load %arg2[%c7, %c0_13] : memref<36x32xf32, #tpu.memory_space<vmem>>, vector<1x32xf32>
    %45 = vector.broadcast %44 : vector<1x32xf32> to vector<16x32xf32>
    %46 = arith.mulf %45, %43 : vector<16x32xf32>
    %47 = arith.addf %42, %46 : vector<16x32xf32>
    %48 = vector.extract_strided_slice %7 {offsets = [2, 2], sizes = [16, 32], strides = [1, 1]} : vector<18x34xf32> to vector<16x32xf32>
    %c8 = arith.constant 8 : index
    %c0_14 = arith.constant 0 : index
    %49 = vector.load %arg2[%c8, %c0_14] : memref<36x32xf32, #tpu.memory_space<vmem>>, vector<1x32xf32>
    %50 = vector.broadcast %49 : vector<1x32xf32> to vector<16x32xf32>
    %51 = arith.mulf %50, %48 : vector<16x32xf32>
    %52 = arith.addf %47, %51 : vector<16x32xf32>
    %c0_15 = arith.constant 0 : index
    %c1_16 = arith.constant 1 : index
    %c0_17 = arith.constant 0 : index
    %c0_18 = arith.constant 0 : index
    %53 = vector.load %arg1[%c0_15, %c1_16, %c0_17, %c0_18] : memref<1x4x16x16xf32, #tpu.memory_space<vmem>>, vector<1x1x16x16xf32>
    %54 = vector.shape_cast %53 : vector<1x1x16x16xf32> to vector<16x16xf32>
    %55 = tpu.concatenate %54, %54 in 1 : vector<16x16xf32>, vector<16x16xf32> -> vector<16x32xf32>
    %cst_19 = arith.constant 0.000000e+00 : f32
    %56 = vector.broadcast %cst_19 : f32 to vector<1x32xf32>
    %57 = tpu.concatenate %56, %55, %56 in 0 : vector<1x32xf32>, vector<16x32xf32>, vector<1x32xf32> -> vector<18x32xf32>
    %cst_20 = arith.constant 0.000000e+00 : f32
    %58 = vector.broadcast %cst_20 : f32 to vector<18x1xf32>
    %59 = tpu.concatenate %58, %57, %58 in 1 : vector<18x1xf32>, vector<18x32xf32>, vector<18x1xf32> -> vector<18x34xf32>
    %60 = vector.extract_strided_slice %59 {offsets = [0, 0], sizes = [16, 32], strides = [1, 1]} : vector<18x34xf32> to vector<16x32xf32>
    %c9 = arith.constant 9 : index
    %c0_21 = arith.constant 0 : index
    %61 = vector.load %arg2[%c9, %c0_21] : memref<36x32xf32, #tpu.memory_space<vmem>>, vector<1x32xf32>
    %62 = vector.broadcast %61 : vector<1x32xf32> to vector<16x32xf32>
    %63 = arith.mulf %62, %60 : vector<16x32xf32>
    %64 = arith.addf %52, %63 : vector<16x32xf32>
    %65 = vector.extract_strided_slice %59 {offsets = [0, 1], sizes = [16, 32], strides = [1, 1]} : vector<18x34xf32> to vector<16x32xf32>
    %c10 = arith.constant 10 : index
    %c0_22 = arith.constant 0 : index
    %66 = vector.load %arg2[%c10, %c0_22] : memref<36x32xf32, #tpu.memory_space<vmem>>, vector<1x32xf32>
    %67 = vector.broadcast %66 : vector<1x32xf32> to vector<16x32xf32>
    %68 = arith.mulf %67, %65 : vector<16x32xf32>
    %69 = arith.addf %64, %68 : vector<16x32xf32>
    %70 = vector.extract_strided_slice %59 {offsets = [0, 2], sizes = [16, 32], strides = [1, 1]} : vector<18x34xf32> to vector<16x32xf32>
    %c11 = arith.constant 11 : index
    %c0_23 = arith.constant 0 : index
    %71 = vector.load %arg2[%c11, %c0_23] : memref<36x32xf32, #tpu.memory_space<vmem>>, vector<1x32xf32>
    %72 = vector.broadcast %71 : vector<1x32xf32> to vector<16x32xf32>
    %73 = arith.mulf %72, %70 : vector<16x32xf32>
    %74 = arith.addf %69, %73 : vector<16x32xf32>
    %75 = vector.extract_strided_slice %59 {offsets = [1, 0], sizes = [16, 32], strides = [1, 1]} : vector<18x34xf32> to vector<16x32xf32>
    %c12 = arith.constant 12 : index
    %c0_24 = arith.constant 0 : index
    %76 = vector.load %arg2[%c12, %c0_24] : memref<36x32xf32, #tpu.memory_space<vmem>>, vector<1x32xf32>
    %77 = vector.broadcast %76 : vector<1x32xf32> to vector<16x32xf32>
    %78 = arith.mulf %77, %75 : vector<16x32xf32>
    %79 = arith.addf %74, %78 : vector<16x32xf32>
    %80 = vector.extract_strided_slice %59 {offsets = [1, 1], sizes = [16, 32], strides = [1, 1]} : vector<18x34xf32> to vector<16x32xf32>
    %c13 = arith.constant 13 : index
    %c0_25 = arith.constant 0 : index
    %81 = vector.load %arg2[%c13, %c0_25] : memref<36x32xf32, #tpu.memory_space<vmem>>, vector<1x32xf32>
    %82 = vector.broadcast %81 : vector<1x32xf32> to vector<16x32xf32>
    %83 = arith.mulf %82, %80 : vector<16x32xf32>
    %84 = arith.addf %79, %83 : vector<16x32xf32>
    %85 = vector.extract_strided_slice %59 {offsets = [1, 2], sizes = [16, 32], strides = [1, 1]} : vector<18x34xf32> to vector<16x32xf32>
    %c14 = arith.constant 14 : index
    %c0_26 = arith.constant 0 : index
    %86 = vector.load %arg2[%c14, %c0_26] : memref<36x32xf32, #tpu.memory_space<vmem>>, vector<1x32xf32>
    %87 = vector.broadcast %86 : vector<1x32xf32> to vector<16x32xf32>
    %88 = arith.mulf %87, %85 : vector<16x32xf32>
    %89 = arith.addf %84, %88 : vector<16x32xf32>
    %90 = vector.extract_strided_slice %59 {offsets = [2, 0], sizes = [16, 32], strides = [1, 1]} : vector<18x34xf32> to vector<16x32xf32>
    %c15 = arith.constant 15 : index
    %c0_27 = arith.constant 0 : index
    %91 = vector.load %arg2[%c15, %c0_27] : memref<36x32xf32, #tpu.memory_space<vmem>>, vector<1x32xf32>
    %92 = vector.broadcast %91 : vector<1x32xf32> to vector<16x32xf32>
    %93 = arith.mulf %92, %90 : vector<16x32xf32>
    %94 = arith.addf %89, %93 : vector<16x32xf32>
    %95 = vector.extract_strided_slice %59 {offsets = [2, 1], sizes = [16, 32], strides = [1, 1]} : vector<18x34xf32> to vector<16x32xf32>
    %c16 = arith.constant 16 : index
    %c0_28 = arith.constant 0 : index
    %96 = vector.load %arg2[%c16, %c0_28] : memref<36x32xf32, #tpu.memory_space<vmem>>, vector<1x32xf32>
    %97 = vector.broadcast %96 : vector<1x32xf32> to vector<16x32xf32>
    %98 = arith.mulf %97, %95 : vector<16x32xf32>
    %99 = arith.addf %94, %98 : vector<16x32xf32>
    %100 = vector.extract_strided_slice %59 {offsets = [2, 2], sizes = [16, 32], strides = [1, 1]} : vector<18x34xf32> to vector<16x32xf32>
    %c17 = arith.constant 17 : index
    %c0_29 = arith.constant 0 : index
    %101 = vector.load %arg2[%c17, %c0_29] : memref<36x32xf32, #tpu.memory_space<vmem>>, vector<1x32xf32>
    %102 = vector.broadcast %101 : vector<1x32xf32> to vector<16x32xf32>
    %103 = arith.mulf %102, %100 : vector<16x32xf32>
    %104 = arith.addf %99, %103 : vector<16x32xf32>
    %c0_30 = arith.constant 0 : index
    %c2_31 = arith.constant 2 : index
    %c0_32 = arith.constant 0 : index
    %c0_33 = arith.constant 0 : index
    %105 = vector.load %arg1[%c0_30, %c2_31, %c0_32, %c0_33] : memref<1x4x16x16xf32, #tpu.memory_space<vmem>>, vector<1x1x16x16xf32>
    %106 = vector.shape_cast %105 : vector<1x1x16x16xf32> to vector<16x16xf32>
    %107 = tpu.concatenate %106, %106 in 1 : vector<16x16xf32>, vector<16x16xf32> -> vector<16x32xf32>
    %cst_34 = arith.constant 0.000000e+00 : f32
    %108 = vector.broadcast %cst_34 : f32 to vector<1x32xf32>
    %109 = tpu.concatenate %108, %107, %108 in 0 : vector<1x32xf32>, vector<16x32xf32>, vector<1x32xf32> -> vector<18x32xf32>
    %cst_35 = arith.constant 0.000000e+00 : f32
    %110 = vector.broadcast %cst_35 : f32 to vector<18x1xf32>
    %111 = tpu.concatenate %110, %109, %110 in 1 : vector<18x1xf32>, vector<18x32xf32>, vector<18x1xf32> -> vector<18x34xf32>
    %112 = vector.extract_strided_slice %111 {offsets = [0, 0], sizes = [16, 32], strides = [1, 1]} : vector<18x34xf32> to vector<16x32xf32>
    %c18 = arith.constant 18 : index
    %c0_36 = arith.constant 0 : index
    %113 = vector.load %arg2[%c18, %c0_36] : memref<36x32xf32, #tpu.memory_space<vmem>>, vector<1x32xf32>
    %114 = vector.broadcast %113 : vector<1x32xf32> to vector<16x32xf32>
    %115 = arith.mulf %114, %112 : vector<16x32xf32>
    %116 = arith.addf %104, %115 : vector<16x32xf32>
    %117 = vector.extract_strided_slice %111 {offsets = [0, 1], sizes = [16, 32], strides = [1, 1]} : vector<18x34xf32> to vector<16x32xf32>
    %c19 = arith.constant 19 : index
    %c0_37 = arith.constant 0 : index
    %118 = vector.load %arg2[%c19, %c0_37] : memref<36x32xf32, #tpu.memory_space<vmem>>, vector<1x32xf32>
    %119 = vector.broadcast %118 : vector<1x32xf32> to vector<16x32xf32>
    %120 = arith.mulf %119, %117 : vector<16x32xf32>
    %121 = arith.addf %116, %120 : vector<16x32xf32>
    %122 = vector.extract_strided_slice %111 {offsets = [0, 2], sizes = [16, 32], strides = [1, 1]} : vector<18x34xf32> to vector<16x32xf32>
    %c20 = arith.constant 20 : index
    %c0_38 = arith.constant 0 : index
    %123 = vector.load %arg2[%c20, %c0_38] : memref<36x32xf32, #tpu.memory_space<vmem>>, vector<1x32xf32>
    %124 = vector.broadcast %123 : vector<1x32xf32> to vector<16x32xf32>
    %125 = arith.mulf %124, %122 : vector<16x32xf32>
    %126 = arith.addf %121, %125 : vector<16x32xf32>
    %127 = vector.extract_strided_slice %111 {offsets = [1, 0], sizes = [16, 32], strides = [1, 1]} : vector<18x34xf32> to vector<16x32xf32>
    %c21 = arith.constant 21 : index
    %c0_39 = arith.constant 0 : index
    %128 = vector.load %arg2[%c21, %c0_39] : memref<36x32xf32, #tpu.memory_space<vmem>>, vector<1x32xf32>
    %129 = vector.broadcast %128 : vector<1x32xf32> to vector<16x32xf32>
    %130 = arith.mulf %129, %127 : vector<16x32xf32>
    %131 = arith.addf %126, %130 : vector<16x32xf32>
    %132 = vector.extract_strided_slice %111 {offsets = [1, 1], sizes = [16, 32], strides = [1, 1]} : vector<18x34xf32> to vector<16x32xf32>
    %c22 = arith.constant 22 : index
    %c0_40 = arith.constant 0 : index
    %133 = vector.load %arg2[%c22, %c0_40] : memref<36x32xf32, #tpu.memory_space<vmem>>, vector<1x32xf32>
    %134 = vector.broadcast %133 : vector<1x32xf32> to vector<16x32xf32>
    %135 = arith.mulf %134, %132 : vector<16x32xf32>
    %136 = arith.addf %131, %135 : vector<16x32xf32>
    %137 = vector.extract_strided_slice %111 {offsets = [1, 2], sizes = [16, 32], strides = [1, 1]} : vector<18x34xf32> to vector<16x32xf32>
    %c23 = arith.constant 23 : index
    %c0_41 = arith.constant 0 : index
    %138 = vector.load %arg2[%c23, %c0_41] : memref<36x32xf32, #tpu.memory_space<vmem>>, vector<1x32xf32>
    %139 = vector.broadcast %138 : vector<1x32xf32> to vector<16x32xf32>
    %140 = arith.mulf %139, %137 : vector<16x32xf32>
    %141 = arith.addf %136, %140 : vector<16x32xf32>
    %142 = vector.extract_strided_slice %111 {offsets = [2, 0], sizes = [16, 32], strides = [1, 1]} : vector<18x34xf32> to vector<16x32xf32>
    %c24 = arith.constant 24 : index
    %c0_42 = arith.constant 0 : index
    %143 = vector.load %arg2[%c24, %c0_42] : memref<36x32xf32, #tpu.memory_space<vmem>>, vector<1x32xf32>
    %144 = vector.broadcast %143 : vector<1x32xf32> to vector<16x32xf32>
    %145 = arith.mulf %144, %142 : vector<16x32xf32>
    %146 = arith.addf %141, %145 : vector<16x32xf32>
    %147 = vector.extract_strided_slice %111 {offsets = [2, 1], sizes = [16, 32], strides = [1, 1]} : vector<18x34xf32> to vector<16x32xf32>
    %c25 = arith.constant 25 : index
    %c0_43 = arith.constant 0 : index
    %148 = vector.load %arg2[%c25, %c0_43] : memref<36x32xf32, #tpu.memory_space<vmem>>, vector<1x32xf32>
    %149 = vector.broadcast %148 : vector<1x32xf32> to vector<16x32xf32>
    %150 = arith.mulf %149, %147 : vector<16x32xf32>
    %151 = arith.addf %146, %150 : vector<16x32xf32>
    %152 = vector.extract_strided_slice %111 {offsets = [2, 2], sizes = [16, 32], strides = [1, 1]} : vector<18x34xf32> to vector<16x32xf32>
    %c26 = arith.constant 26 : index
    %c0_44 = arith.constant 0 : index
    %153 = vector.load %arg2[%c26, %c0_44] : memref<36x32xf32, #tpu.memory_space<vmem>>, vector<1x32xf32>
    %154 = vector.broadcast %153 : vector<1x32xf32> to vector<16x32xf32>
    %155 = arith.mulf %154, %152 : vector<16x32xf32>
    %156 = arith.addf %151, %155 : vector<16x32xf32>
    %c0_45 = arith.constant 0 : index
    %c3_46 = arith.constant 3 : index
    %c0_47 = arith.constant 0 : index
    %c0_48 = arith.constant 0 : index
    %157 = vector.load %arg1[%c0_45, %c3_46, %c0_47, %c0_48] : memref<1x4x16x16xf32, #tpu.memory_space<vmem>>, vector<1x1x16x16xf32>
    %158 = vector.shape_cast %157 : vector<1x1x16x16xf32> to vector<16x16xf32>
    %159 = tpu.concatenate %158, %158 in 1 : vector<16x16xf32>, vector<16x16xf32> -> vector<16x32xf32>
    %cst_49 = arith.constant 0.000000e+00 : f32
    %160 = vector.broadcast %cst_49 : f32 to vector<1x32xf32>
    %161 = tpu.concatenate %160, %159, %160 in 0 : vector<1x32xf32>, vector<16x32xf32>, vector<1x32xf32> -> vector<18x32xf32>
    %cst_50 = arith.constant 0.000000e+00 : f32
    %162 = vector.broadcast %cst_50 : f32 to vector<18x1xf32>
    %163 = tpu.concatenate %162, %161, %162 in 1 : vector<18x1xf32>, vector<18x32xf32>, vector<18x1xf32> -> vector<18x34xf32>
    %164 = vector.extract_strided_slice %163 {offsets = [0, 0], sizes = [16, 32], strides = [1, 1]} : vector<18x34xf32> to vector<16x32xf32>
    %c27 = arith.constant 27 : index
    %c0_51 = arith.constant 0 : index
    %165 = vector.load %arg2[%c27, %c0_51] : memref<36x32xf32, #tpu.memory_space<vmem>>, vector<1x32xf32>
    %166 = vector.broadcast %165 : vector<1x32xf32> to vector<16x32xf32>
    %167 = arith.mulf %166, %164 : vector<16x32xf32>
    %168 = arith.addf %156, %167 : vector<16x32xf32>
    %169 = vector.extract_strided_slice %163 {offsets = [0, 1], sizes = [16, 32], strides = [1, 1]} : vector<18x34xf32> to vector<16x32xf32>
    %c28 = arith.constant 28 : index
    %c0_52 = arith.constant 0 : index
    %170 = vector.load %arg2[%c28, %c0_52] : memref<36x32xf32, #tpu.memory_space<vmem>>, vector<1x32xf32>
    %171 = vector.broadcast %170 : vector<1x32xf32> to vector<16x32xf32>
    %172 = arith.mulf %171, %169 : vector<16x32xf32>
    %173 = arith.addf %168, %172 : vector<16x32xf32>
    %174 = vector.extract_strided_slice %163 {offsets = [0, 2], sizes = [16, 32], strides = [1, 1]} : vector<18x34xf32> to vector<16x32xf32>
    %c29 = arith.constant 29 : index
    %c0_53 = arith.constant 0 : index
    %175 = vector.load %arg2[%c29, %c0_53] : memref<36x32xf32, #tpu.memory_space<vmem>>, vector<1x32xf32>
    %176 = vector.broadcast %175 : vector<1x32xf32> to vector<16x32xf32>
    %177 = arith.mulf %176, %174 : vector<16x32xf32>
    %178 = arith.addf %173, %177 : vector<16x32xf32>
    %179 = vector.extract_strided_slice %163 {offsets = [1, 0], sizes = [16, 32], strides = [1, 1]} : vector<18x34xf32> to vector<16x32xf32>
    %c30 = arith.constant 30 : index
    %c0_54 = arith.constant 0 : index
    %180 = vector.load %arg2[%c30, %c0_54] : memref<36x32xf32, #tpu.memory_space<vmem>>, vector<1x32xf32>
    %181 = vector.broadcast %180 : vector<1x32xf32> to vector<16x32xf32>
    %182 = arith.mulf %181, %179 : vector<16x32xf32>
    %183 = arith.addf %178, %182 : vector<16x32xf32>
    %184 = vector.extract_strided_slice %163 {offsets = [1, 1], sizes = [16, 32], strides = [1, 1]} : vector<18x34xf32> to vector<16x32xf32>
    %c31 = arith.constant 31 : index
    %c0_55 = arith.constant 0 : index
    %185 = vector.load %arg2[%c31, %c0_55] : memref<36x32xf32, #tpu.memory_space<vmem>>, vector<1x32xf32>
    %186 = vector.broadcast %185 : vector<1x32xf32> to vector<16x32xf32>
    %187 = arith.mulf %186, %184 : vector<16x32xf32>
    %188 = arith.addf %183, %187 : vector<16x32xf32>
    %189 = vector.extract_strided_slice %163 {offsets = [1, 2], sizes = [16, 32], strides = [1, 1]} : vector<18x34xf32> to vector<16x32xf32>
    %c32 = arith.constant 32 : index
    %c0_56 = arith.constant 0 : index
    %190 = vector.load %arg2[%c32, %c0_56] : memref<36x32xf32, #tpu.memory_space<vmem>>, vector<1x32xf32>
    %191 = vector.broadcast %190 : vector<1x32xf32> to vector<16x32xf32>
    %192 = arith.mulf %191, %189 : vector<16x32xf32>
    %193 = arith.addf %188, %192 : vector<16x32xf32>
    %194 = vector.extract_strided_slice %163 {offsets = [2, 0], sizes = [16, 32], strides = [1, 1]} : vector<18x34xf32> to vector<16x32xf32>
    %c33 = arith.constant 33 : index
    %c0_57 = arith.constant 0 : index
    %195 = vector.load %arg2[%c33, %c0_57] : memref<36x32xf32, #tpu.memory_space<vmem>>, vector<1x32xf32>
    %196 = vector.broadcast %195 : vector<1x32xf32> to vector<16x32xf32>
    %197 = arith.mulf %196, %194 : vector<16x32xf32>
    %198 = arith.addf %193, %197 : vector<16x32xf32>
    %199 = vector.extract_strided_slice %163 {offsets = [2, 1], sizes = [16, 32], strides = [1, 1]} : vector<18x34xf32> to vector<16x32xf32>
    %c34 = arith.constant 34 : index
    %c0_58 = arith.constant 0 : index
    %200 = vector.load %arg2[%c34, %c0_58] : memref<36x32xf32, #tpu.memory_space<vmem>>, vector<1x32xf32>
    %201 = vector.broadcast %200 : vector<1x32xf32> to vector<16x32xf32>
    %202 = arith.mulf %201, %199 : vector<16x32xf32>
    %203 = arith.addf %198, %202 : vector<16x32xf32>
    %204 = vector.extract_strided_slice %163 {offsets = [2, 2], sizes = [16, 32], strides = [1, 1]} : vector<18x34xf32> to vector<16x32xf32>
    %c35 = arith.constant 35 : index
    %c0_59 = arith.constant 0 : index
    %205 = vector.load %arg2[%c35, %c0_59] : memref<36x32xf32, #tpu.memory_space<vmem>>, vector<1x32xf32>
    %206 = vector.broadcast %205 : vector<1x32xf32> to vector<16x32xf32>
    %207 = arith.mulf %206, %204 : vector<16x32xf32>
    %208 = arith.addf %203, %207 : vector<16x32xf32>
    %c0_60 = arith.constant 0 : index
    %c0_61 = arith.constant 0 : index
    %209 = vector.load %arg3[%c0_60, %c0_61] : memref<1x32xf32, #tpu.memory_space<vmem>>, vector<1x32xf32>
    %210 = vector.broadcast %209 : vector<1x32xf32> to vector<16x32xf32>
    %211 = arith.addf %208, %210 : vector<16x32xf32>
    %c0_62 = arith.constant 0 : index
    %c0_63 = arith.constant 0 : index
    %c0_64 = arith.constant 0 : index
    %212 = vector.load %arg4[%c0_62, %c0_63, %c0_64] : memref<1x16x32xf32, #tpu.memory_space<vmem>>, vector<1x16x32xf32>
    %213 = vector.shape_cast %212 : vector<1x16x32xf32> to vector<16x32xf32>
    %214 = vector.shape_cast %211 : vector<16x32xf32> to vector<1x16x32xf32>
    tpu.vector_store %arg4[%c0_62, %c0_63, %c0_64], %214 {strides = array<i32>} : memref<1x16x32xf32, #tpu.memory_space<vmem>>, vector<1x16x32xf32>,
    return
  }
  func.func @transform_0(%arg0: i32) -> (i32, i32, i32, i32) {
    %c0_i32 = arith.constant 0 : i32
    %c0_i32_0 = arith.constant 0 : i32
    %c0_i32_1 = arith.constant 0 : i32
    %c0_i32_2 = arith.constant 0 : i32
    return %arg0, %c0_i32, %c0_i32_0, %c0_i32_1 : i32, i32, i32, i32
  }
  func.func @transform_1(%arg0: i32) -> (i32, i32) {
    %c0_i32 = arith.constant 0 : i32
    %c0_i32_0 = arith.constant 0 : i32
    %c0_i32_1 = arith.constant 0 : i32
    return %c0_i32, %c0_i32_0 : i32, i32
  }
  func.func @transform_2(%arg0: i32) -> (i32, i32) {
    %c0_i32 = arith.constant 0 : i32
    %c0_i32_0 = arith.constant 0 : i32
    %c0_i32_1 = arith.constant 0 : i32
    return %c0_i32, %c0_i32_0 : i32, i32
  }
  func.func @transform_3(%arg0: i32) -> (i32, i32, i32) {
    %c0_i32 = arith.constant 0 : i32
    %c0_i32_0 = arith.constant 0 : i32
    %c0_i32_1 = arith.constant 0 : i32
    return %arg0, %c0_i32, %c0_i32_0 : i32, i32, i32
  }
}

</mosaic_0001>

<llo_original>
// kernel: tpu_custom_call.1
$region0: #{tpu_custom_call.1}
  #allocation0 [shape = 'u32[]', space=smem, size = 0x4, offset = 0x4, fixed_abs, tag = 'smem constant byte address 0x4 - core index']
  #allocation1 [shape = 'u32[72,128]{1,0:T(1,128)}', space=vmem, size = 0x9000, scoped, tag = 'internal scratch']
  %s0 = inlined_call_operand.hbm [shape: f32[2,4,16,16], index: 0, kind: input, shape index: {}]
  %s1 = inlined_call_operand.vmem [shape: f32[36,32], index: 1, kind: input, shape index: {}]
  %s2 = inlined_call_operand.vmem [shape: f32[1,32], index: 2, kind: input, shape index: {}]
  %s3 = inlined_call_operand.hbm [shape: f32[2,16,32], index: 3, kind: output, shape index: {}]
  %s4 = sld [smem:[#allocation0]]
  $region49: #{tpu_custom_call.1} parent=0
    _
  %s6 = ssub.s32 1, %s4
  %s7 = scalar_select 0, %s6, %s4
  $region1: #{tpu_custom_call.1} parent=0
    #allocation2 [shape = 'u8[65536]{0}', space=vmem, size = 0x10000, scoped, tag = 'input window, operand 0']
    #allocation3 [shape = 's32[2]{0}', space=sflag, size = 0x8, scoped, tag = 'scoped memory for tpu_custom_call.1']
    #allocation4 [shape = 's32[2]{0}', space=sflag, size = 0x8, scoped, tag = 'scoped memory for tpu_custom_call.1']
    #allocation5 [shape = 'u8[16384]{0}', space=vmem, size = 0x4000, scoped, tag = 'output window, operand 0']
    %8 = vsyncpa [#allocation3], 0
    %s9 = scalar_lea.sflag [#allocation3], 1
    %10 = vsyncpa %s9, 0
    %11 = vsyncpa [#allocation4], 0
    %s12 = scalar_lea.sflag [#allocation4], 1
    %13 = vsyncpa %s12, 0
    loop: start=0, step=1, limit=4
    $region2: #{tpu_custom_call.1} parent=1 // loop_pre_header
      _
    $region3: #{tpu_custom_call.1} parent=1 // loop_header
      %s15 = sphi 0, %s19
      %p16 = scmp.ge.s32.totalorder %s15, 4
      %s25 = sphi 0, %s27
      %s28 = sphi 0, %s25
      %s29 = sphi 0, %s28
      %s45 = sphi 0, %s29
      %s49 = sphi 0, %s49
      %s51 = sphi 0, %s49
      %s52 = sphi 0, %s51
      %s66 = sphi 0, %s52
      %s70 = sphi 0, %s70
      %s72 = sphi 0, %s70
      %s73 = sphi 0, %s72
      %s87 = sphi 0, %s73
      %s93 = sphi 0, %s95
      %s96 = sphi 0, %s93
      %s97 = sphi 0, %s96
      %s113 = sphi 0, %s97
    $region4: #{tpu_custom_call.1} parent=1 // loop_header_branch
      %18 = sbr.rel (%p16) target = $region8
    $region5: #{tpu_custom_call.1} parent=1 // loop_body
      %s20 = ssub.s32 %s15, 1
      %s21 = ssub.s32 %s15, 2
      %s22 = sadd.s32 %s15, 1
      %s23 = ssub.s32 %s15, %s22
      %p24 = scmp.eq.s32.totalorder %s23, 0
      %s26 = sadd.s32 %s25, 1
      %s27 = scalar_select %p24, %s25, %s26
      %p30 = pneg %p24
      %p31 = scmp.eq.s32.totalorder %s15, 1
      %p32 = por %p30, %p31
      %p33 = scmp.ne.s32.totalorder %s25, %s28
      %p34 = scmp.eq.s32.totalorder %s15, 0
      %p35 = por %p33, %p34
      %p36 = scmp.ne.s32.totalorder %s25, %s28
      %p37 = scmp.eq.s32.totalorder %s20, 1
      %p38 = por %p36, %p37
      %p39 = scmp.ne.s32.totalorder %s28, %s29
      %p40 = scmp.eq.s32.totalorder %s20, 0
      %p41 = por %p39, %p40
      %p42 = scmp.ne.s32.totalorder %s28, %s29
      %p43 = scmp.eq.s32.totalorder %s21, 1
      %p44 = por %p42, %p43
      %p46 = scmp.ne.s32.totalorder %s29, %s45
      %p47 = scmp.eq.s32.totalorder %s21, 0
      %p48 = por %p46, %p47
      %s50 = sadd.s32 %s49, 1
      %p53 = scmp.eq.s32.totalorder %s15, 1
      %p54 = scmp.ne.s32.totalorder %s49, %s51
      %p55 = scmp.eq.s32.totalorder %s15, 0
      %p56 = por %p54, %p55
      %p57 = scmp.ne.s32.totalorder %s49, %s51
      %p58 = scmp.eq.s32.totalorder %s20, 1
      %p59 = por %p57, %p58
      %p60 = scmp.ne.s32.totalorder %s51, %s52
      %p61 = scmp.eq.s32.totalorder %s20, 0
      %p62 = por %p60, %p61
      %p63 = scmp.ne.s32.totalorder %s51, %s52
      %p64 = scmp.eq.s32.totalorder %s21, 1
      %p65 = por %p63, %p64
      %p67 = scmp.ne.s32.totalorder %s52, %s66
      %p68 = scmp.eq.s32.totalorder %s21, 0
      %p69 = por %p67, %p68
      %s71 = sadd.s32 %s70, 1
      %p74 = scmp.eq.s32.totalorder %s15, 1
      %p75 = scmp.ne.s32.totalorder %s70, %s72
      %p76 = scmp.eq.s32.totalorder %s15, 0
      %p77 = por %p75, %p76
      %p78 = scmp.ne.s32.totalorder %s70, %s72
      %p79 = scmp.eq.s32.totalorder %s20, 1
      %p80 = por %p78, %p79
      %p81 = scmp.ne.s32.totalorder %s72, %s73
      %p82 = scmp.eq.s32.totalorder %s20, 0
      %p83 = por %p81, %p82
      %p84 = scmp.ne.s32.totalorder %s72, %s73
      %p85 = scmp.eq.s32.totalorder %s21, 1
      %p86 = por %p84, %p85
      %p88 = scmp.ne.s32.totalorder %s73, %s87
      %p89 = scmp.eq.s32.totalorder %s21, 0
      %p90 = por %p88, %p89
      %s91 = ssub.s32 %s15, %s22
      %p92 = scmp.eq.s32.totalorder %s91, 0
      %s94 = sadd.s32 %s93, 1
      %s95 = scalar_select %p92, %s93, %s94
      %p98 = pneg %p92
      %p99 = scmp.eq.s32.totalorder %s15, 1
      %p100 = por %p98, %p99
      %p101 = scmp.ne.s32.totalorder %s93, %s96
      %p102 = scmp.eq.s32.totalorder %s15, 0
      %p103 = por %p101, %p102
      %p104 = scmp.ne.s32.totalorder %s93, %s96
      %p105 = scmp.eq.s32.totalorder %s20, 1
      %p106 = por %p104, %p105
      %p107 = scmp.ne.s32.totalorder %s96, %s97
      %p108 = scmp.eq.s32.totalorder %s20, 0
      %p109 = por %p107, %p108
      %p110 = scmp.ne.s32.totalorder %s96, %s97
      %p111 = scmp.eq.s32.totalorder %s21, 1
      %p112 = por %p110, %p111
      %p114 = scmp.ne.s32.totalorder %s97, %s113
      %p115 = scmp.eq.s32.totalorder %s21, 0
      %p116 = por %p114, %p115
      %p117 = scmp.le.s32.totalorder 1, %s15
      %p118 = scmp.lt.s32.totalorder %s15, 3
      %p119 = pnand %p117, %p118
      %p120 = pneg %p119
      // Predicated region
      $region9: #{tpu_custom_call.1} parent=5 // pred_check
        _
      $region10: #{tpu_custom_call.1} parent=5 // pred_check_branch
        %122 = sbr.rel (%p119) target = $region12
      $region11: #{tpu_custom_call.1} parent=5 // pred_region
        %s123 = ssub.s32 %s15, 1
        // Predicated region
        $region13: #{tpu_custom_call.1} parent=11 // pred_check
          %p124 = pneg %p62
        $region14: #{tpu_custom_call.1} parent=11 // pred_check_branch
          %126 = sbr.rel (%p124) target = $region16
        $region15: #{tpu_custom_call.1} parent=11 // pred_region
          _
        $region16: #{tpu_custom_call.1} parent=11 // pred_fallthru
          _
        // Predicated region
        $region17: #{tpu_custom_call.1} parent=11 // pred_check
          %p127 = pneg %p83
        $region18: #{tpu_custom_call.1} parent=11 // pred_check_branch
          %129 = sbr.rel (%p127) target = $region20
        $region19: #{tpu_custom_call.1} parent=11 // pred_region
          _
        $region20: #{tpu_custom_call.1} parent=11 // pred_fallthru
          _
      $region12: #{tpu_custom_call.1} parent=5 // pred_fallthru
        _
      %p130 = scmp.lt.s32.totalorder %s15, 2
      // Predicated region
      $region21: #{tpu_custom_call.1} parent=5 // pred_check
        %p131 = pneg %p130
      $region22: #{tpu_custom_call.1} parent=5 // pred_check_branch
        %133 = sbr.rel (%p131) target = $region24
      $region23: #{tpu_custom_call.1} parent=5 // pred_region
        // Predicated region
        $region25: #{tpu_custom_call.1} parent=23 // pred_check
          %p134 = pneg %p35
        $region26: #{tpu_custom_call.1} parent=23 // pred_check_branch
          %136 = sbr.rel (%p134) target = $region28
        $region27: #{tpu_custom_call.1} parent=23 // pred_region
          %s137 = sand.u32 %s25, 1
          %s138 = scalar_lea.sflag [#allocation3], %s137
          %s139 = sand.u32 %s25, 1
          %s140 = smul.addr %s139, 64
          %s141 = scalar_lea.vmem [#allocation2], %s140
          %143 = vsyncadd %s138, 0
          %s144 = smul.addr %s15, 8
          %s145 = smul.addr %s144, 8
          %s146 = scalar_lea.hbm %s0, %s145
          %s147 = sshll.u32 %s146, 4
          %s148 = int_to_ptr.hbm [resolvable:$true] %s147
          %s149 = sshll.u32 %s141, 4
          %s150 = int_to_ptr.vmem [resolvable:$true] %s149
          %155 = dma.hbm_to_vmem [thread:$0]  %s148, 1024, %s150, %s138, 128, 128, 8
        $region28: #{tpu_custom_call.1} parent=23 // pred_fallthru
          _
      $region24: #{tpu_custom_call.1} parent=5 // pred_fallthru
        _
      %p156 = scmp.le.s32.totalorder 1, %s15
      %p157 = scmp.lt.s32.totalorder %s15, 3
      %p158 = pnand %p156, %p157
      %p159 = pneg %p158
      // Predicated region
      $region29: #{tpu_custom_call.1} parent=5 // pred_check
        _
      $region30: #{tpu_custom_call.1} parent=5 // pred_check_branch
        %161 = sbr.rel (%p158) target = $region32
      $region31: #{tpu_custom_call.1} parent=5 // pred_region
        %s162 = ssub.s32 %s15, 1
        %s163 = sand.u32 %s28, 1
        %s164 = scalar_lea.sflag [#allocation3], %s163
        %s165 = sand.u32 %s28, 1
        %s166 = smul.addr %s165, 64
        %s167 = scalar_lea.vmem [#allocation2], %s166
        // Predicated region
        $region33: #{tpu_custom_call.1} parent=31 // pred_check
          %p168 = pneg %p41
        $region34: #{tpu_custom_call.1} parent=31 // pred_check_branch
          %170 = sbr.rel (%p168) target = $region36
        $region35: #{tpu_custom_call.1} parent=31 // pred_region
          %172 = dma.done %s164, 1024
        $region36: #{tpu_custom_call.1} parent=31 // pred_fallthru
          _
        %s173 = sand.u32 %s28, 1
        %s174 = scalar_lea.sflag [#allocation3], %s173
        %s175 = sand.u32 %s28, 1
        %s176 = smul.addr %s175, 64
        %s177 = scalar_lea.vmem [#allocation2], %s176
        %p178 = pneg %p41
        %p179 = pneg %p38
        %p180 = pneg %p62
        %p181 = pneg %p59
        %p182 = pneg %p83
        %p183 = pneg %p80
        %p184 = pneg %p109
        %p185 = pneg %p106
        %s186 = sand.u32 %s96, 1
        %s187 = scalar_lea.sflag [#allocation4], %s186
        %s188 = sand.u32 %s96, 1
        %s189 = smul.addr %s188, 16
        %s190 = scalar_lea.vmem [#allocation5], %s189
        %v191 = vld [vmem:[%s167] sm:$0xff]
        %v192 = vld [vmem:[%s167 + $0x8] sm:$0xff]
        %195 = vrot.lane.b32.xlu0 %v191, 16
        %v196 = vpop.permute.xlu0 %195
        %197 = vrot.lane.b32.xlu0 %v192, 16
        %v198 = vpop.permute.xlu0 %197
        %vm201 = vcmask 130048
        %v202 = vsel %vm201, %v191, %v196
        %v203 = vsel %vm201, %v192, %v198
        %vm206 = vcmask 1040384
        %v207 = vrot.slane %v202, 7
        %v208 = vrot.slane %v203, 7
        %v209 = vsel %vm206, %v207, %v208
        %v212 = vsel %vm206, 0.0, %v207
        %v213 = vsel %vm206, %v208, 0.0
        %216 = vrot.lane.b32.xlu0 %v212, 1
        %v217 = vpop.permute.xlu0 %216
        %218 = vrot.lane.b32.xlu0 %v209, 1
        %v219 = vpop.permute.xlu0 %218
        %220 = vrot.lane.b32.xlu0 %v213, 1
        %v221 = vpop.permute.xlu0 %220
        %vm225 = vcmask 7168
        %v226 = vsel %vm225, 0.0, %v217
        %v227 = vsel %vm225, 0.0, %v219
        %v228 = vsel %vm225, 0.0, %v221
        %vm229 = vcmask 269312
        %v230 = vsel %vm229, %v226, 0.0
        %v231 = vsel %vm229, %v227, 0.0
        %v232 = vsel %vm229, %v228, 0.0
        %v233 = vld [vmem:[%s1] sm:$0x1]
        %v234 = vperm.slane %v233, 0
        %v235 = vmul.f32 %v234, %v230
        %v236 = vmul.f32 %v234, %v231
        %v237 = vadd.f32 %v235, 0.0
        %v238 = vadd.f32 %v236, 0.0
        %v239 = vld [vmem:[%s1 + $0x1] sm:$0x1]
        %v240 = vperm.slane %v239, 0
        %243 = vrot.lane.b32.xlu0 %v230, 127
        %v244 = vpop.permute.xlu0 %243
        %245 = vrot.lane.b32.xlu0 %v231, 127
        %v246 = vpop.permute.xlu0 %245
        %v249 = vmul.f32 %v240, %v244
        %v250 = vmul.f32 %v240, %v246
        %v251 = vadd.f32 %v237, %v249
        %v252 = vadd.f32 %v238, %v250
        %v253 = vld [vmem:[%s1 + $0x2] sm:$0x1]
        %v254 = vperm.slane %v253, 0
        %255 = vrot.lane.b32.xlu0 %v230, 126
        %v256 = vpop.permute.xlu0 %255
        %257 = vrot.lane.b32.xlu0 %v231, 126
        %v258 = vpop.permute.xlu0 %257
        %v261 = vmul.f32 %v254, %v256
        %v262 = vmul.f32 %v254, %v258
        %v263 = vadd.f32 %v251, %v261
        %v264 = vadd.f32 %v252, %v262
        %v265 = vld [vmem:[%s1 + $0x3] sm:$0x1]
        %v266 = vperm.slane %v265, 0
        %v267 = vmul.f32 %v266, %v230
        %v268 = vmul.f32 %v266, %v231
        %v269 = vmul.f32 %v266, %v232
        %vm273 = vcmask 1046528
        %v274 = vrot.slane %v267, 1
        %v275 = vrot.slane %v268, 1
        %v276 = vsel %vm273, %v274, %v275
        %v277 = vrot.slane %v269, 1
        %v278 = vsel %vm273, %v275, %v277
        %v281 = vadd.f32 %v263, %v276
        %v282 = vadd.f32 %v264, %v278
        %v283 = vld [vmem:[%s1 + $0x4] sm:$0x1]
        %v284 = vperm.slane %v283, 0
        %v286 = vrot.slane %v230, 1
        %v287 = vrot.slane %v231, 1
        %v288 = vsel %vm273, %v286, %v287
        %v289 = vrot.slane %v232, 1
        %v290 = vsel %vm273, %v287, %v289
        %291 = vrot.lane.b32.xlu0 %v288, 127
        %v292 = vpop.permute.xlu0 %291
        %293 = vrot.lane.b32.xlu0 %v290, 127
        %v294 = vpop.permute.xlu0 %293
        %v297 = vmul.f32 %v284, %v292
        %v298 = vmul.f32 %v284, %v294
        %v299 = vadd.f32 %v281, %v297
        %v300 = vadd.f32 %v282, %v298
        %v301 = vld [vmem:[%s1 + $0x5] sm:$0x1]
        %v302 = vperm.slane %v301, 0
        %303 = vrot.lane.b32.xlu0 %v288, 126
        %v304 = vpop.permute.xlu0 %303
        %305 = vrot.lane.b32.xlu0 %v290, 126
        %v306 = vpop.permute.xlu0 %305
        %v309 = vmul.f32 %v302, %v304
        %v310 = vmul.f32 %v302, %v306
        %v311 = vadd.f32 %v299, %v309
        %v312 = vadd.f32 %v300, %v310
        %v313 = vld [vmem:[%s1 + $0x6] sm:$0x1]
        %v314 = vperm.slane %v313, 0
        %v315 = vmul.f32 %v314, %v230
        %v316 = vmul.f32 %v314, %v231
        %v317 = vmul.f32 %v314, %v232
        %vm321 = vcmask 1045504
        %v322 = vrot.slane %v315, 2
        %v323 = vrot.slane %v316, 2
        %v324 = vsel %vm321, %v322, %v323
        %v325 = vrot.slane %v317, 2
        %v326 = vsel %vm321, %v323, %v325
        %v329 = vadd.f32 %v311, %v324
        %v330 = vadd.f32 %v312, %v326
        %v331 = vld [vmem:[%s1 + $0x7] sm:$0x1]
        %v332 = vperm.slane %v331, 0
        %v333 = vrot.slane %v230, 2
        %v334 = vrot.slane %v231, 2
        %v335 = vsel %vm321, %v333, %v334
        %v336 = vrot.slane %v232, 2
        %v337 = vsel %vm321, %v334, %v336
        %338 = vrot.lane.b32.xlu0 %v335, 127
        %v339 = vpop.permute.xlu0 %338
        %340 = vrot.lane.b32.xlu0 %v337, 127
        %v341 = vpop.permute.xlu0 %340
        %v344 = vmul.f32 %v332, %v339
        %v345 = vmul.f32 %v332, %v341
        %v346 = vadd.f32 %v329, %v344
        %v347 = vadd.f32 %v330, %v345
        %v348 = vld [vmem:[%s1 + $0x8] sm:$0x1]
        %v349 = vperm.slane %v348, 0
        %350 = vrot.lane.b32.xlu0 %v335, 126
        %v351 = vpop.permute.xlu0 %350
        %352 = vrot.lane.b32.xlu0 %v337, 126
        %v353 = vpop.permute.xlu0 %352
        %v356 = vmul.f32 %v349, %v351
        %v357 = vmul.f32 %v349, %v353
        %v358 = vadd.f32 %v346, %v356
        %v359 = vadd.f32 %v347, %v357
        %s360 = scalar_lea.vmem %s167, 16 [#allocation2]
        %v361 = vld [vmem:[%s360] sm:$0xff]
        %v362 = vld [vmem:[%s360 + $0x8] sm:$0xff]
        %365 = vrot.lane.b32.xlu0 %v361, 16
        %v366 = vpop.permute.xlu0 %365
        %367 = vrot.lane.b32.xlu0 %v362, 16
        %v368 = vpop.permute.xlu0 %367
        %v371 = vsel %vm201, %v361, %v366
        %v372 = vsel %vm201, %v362, %v368
        %v375 = vrot.slane %v371, 7
        %v376 = vrot.slane %v372, 7
        %v377 = vsel %vm206, %v375, %v376
        %v380 = vsel %vm206, 0.0, %v375
        %v381 = vsel %vm206, %v376, 0.0
        %384 = vrot.lane.b32.xlu0 %v380, 1
        %v385 = vpop.permute.xlu0 %384
        %386 = vrot.lane.b32.xlu0 %v377, 1
        %v387 = vpop.permute.xlu0 %386
        %388 = vrot.lane.b32.xlu0 %v381, 1
        %v389 = vpop.permute.xlu0 %388
        %v393 = vsel %vm225, 0.0, %v385
        %v394 = vsel %vm225, 0.0, %v387
        %v395 = vsel %vm225, 0.0, %v389
        %v396 = vsel %vm229, %v393, 0.0
        %v397 = vsel %vm229, %v394, 0.0
        %v398 = vsel %vm229, %v395, 0.0
        %v399 = vld [vmem:[%s1 + $0x9] sm:$0x1]
        %v400 = vperm.slane %v399, 0
        %v401 = vmul.f32 %v400, %v396
        %v402 = vmul.f32 %v400, %v397
        %v403 = vadd.f32 %v358, %v401
        %v404 = vadd.f32 %v359, %v402
        %v405 = vld [vmem:[%s1 + $0xa] sm:$0x1]
        %v406 = vperm.slane %v405, 0
        %409 = vrot.lane.b32.xlu0 %v396, 127
        %v410 = vpop.permute.xlu0 %409
        %411 = vrot.lane.b32.xlu0 %v397, 127
        %v412 = vpop.permute.xlu0 %411
        %v415 = vmul.f32 %v406, %v410
        %v416 = vmul.f32 %v406, %v412
        %v417 = vadd.f32 %v403, %v415
        %v418 = vadd.f32 %v404, %v416
        %v419 = vld [vmem:[%s1 + $0xb] sm:$0x1]
        %v420 = vperm.slane %v419, 0
        %421 = vrot.lane.b32.xlu0 %v396, 126
        %v422 = vpop.permute.xlu0 %421
        %423 = vrot.lane.b32.xlu0 %v397, 126
        %v424 = vpop.permute.xlu0 %423
        %v427 = vmul.f32 %v420, %v422
        %v428 = vmul.f32 %v420, %v424
        %v429 = vadd.f32 %v417, %v427
        %v430 = vadd.f32 %v418, %v428
        %v431 = vld [vmem:[%s1 + $0xc] sm:$0x1]
        %v432 = vperm.slane %v431, 0
        %v433 = vmul.f32 %v432, %v396
        %v434 = vmul.f32 %v432, %v397
        %v435 = vmul.f32 %v432, %v398
        %v439 = vrot.slane %v433, 1
        %v440 = vrot.slane %v434, 1
        %v441 = vsel %vm273, %v439, %v440
        %v442 = vrot.slane %v435, 1
        %v443 = vsel %vm273, %v440, %v442
        %v446 = vadd.f32 %v429, %v441
        %v447 = vadd.f32 %v430, %v443
        %v448 = vld [vmem:[%s1 + $0xd] sm:$0x1]
        %v449 = vperm.slane %v448, 0
        %v451 = vrot.slane %v396, 1
        %v452 = vrot.slane %v397, 1
        %v453 = vsel %vm273, %v451, %v452
        %v454 = vrot.slane %v398, 1
        %v455 = vsel %vm273, %v452, %v454
        %456 = vrot.lane.b32.xlu0 %v453, 127
        %v457 = vpop.permute.xlu0 %456
        %458 = vrot.lane.b32.xlu0 %v455, 127
        %v459 = vpop.permute.xlu0 %458
        %v462 = vmul.f32 %v449, %v457
        %v463 = vmul.f32 %v449, %v459
        %v464 = vadd.f32 %v446, %v462
        %v465 = vadd.f32 %v447, %v463
        %v466 = vld [vmem:[%s1 + $0xe] sm:$0x1]
        %v467 = vperm.slane %v466, 0
        %468 = vrot.lane.b32.xlu0 %v453, 126
        %v469 = vpop.permute.xlu0 %468
        %470 = vrot.lane.b32.xlu0 %v455, 126
        %v471 = vpop.permute.xlu0 %470
        %v474 = vmul.f32 %v467, %v469
        %v475 = vmul.f32 %v467, %v471
        %v476 = vadd.f32 %v464, %v474
        %v477 = vadd.f32 %v465, %v475
        %v478 = vld [vmem:[%s1 + $0xf] sm:$0x1]
        %v479 = vperm.slane %v478, 0
        %v480 = vmul.f32 %v479, %v396
        %v481 = vmul.f32 %v479, %v397
        %v482 = vmul.f32 %v479, %v398
        %v486 = vrot.slane %v480, 2
        %v487 = vrot.slane %v481, 2
        %v488 = vsel %vm321, %v486, %v487
        %v489 = vrot.slane %v482, 2
        %v490 = vsel %vm321, %v487, %v489
        %v493 = vadd.f32 %v476, %v488
        %v494 = vadd.f32 %v477, %v490
        %v495 = vld [vmem:[%s1 + $0x10] sm:$0x1]
        %v496 = vperm.slane %v495, 0
        %v497 = vrot.slane %v396, 2
        %v498 = vrot.slane %v397, 2
        %v499 = vsel %vm321, %v497, %v498
        %v500 = vrot.slane %v398, 2
        %v501 = vsel %vm321, %v498, %v500
        %502 = vrot.lane.b32.xlu0 %v499, 127
        %v503 = vpop.permute.xlu0 %502
        %504 = vrot.lane.b32.xlu0 %v501, 127
        %v505 = vpop.permute.xlu0 %504
        %v508 = vmul.f32 %v496, %v503
        %v509 = vmul.f32 %v496, %v505
        %v510 = vadd.f32 %v493, %v508
        %v511 = vadd.f32 %v494, %v509
        %v512 = vld [vmem:[%s1 + $0x11] sm:$0x1]
        %v513 = vperm.slane %v512, 0
        %514 = vrot.lane.b32.xlu0 %v499, 126
        %v515 = vpop.permute.xlu0 %514
        %516 = vrot.lane.b32.xlu0 %v501, 126
        %v517 = vpop.permute.xlu0 %516
        %v520 = vmul.f32 %v513, %v515
        %v521 = vmul.f32 %v513, %v517
        %v522 = vadd.f32 %v510, %v520
        %v523 = vadd.f32 %v511, %v521
        %s524 = scalar_lea.vmem %s167, 32 [#allocation2]
        %v525 = vld [vmem:[%s524] sm:$0xff]
        %v526 = vld [vmem:[%s524 + $0x8] sm:$0xff]
        %529 = vrot.lane.b32.xlu0 %v525, 16
        %v530 = vpop.permute.xlu0 %529
        %531 = vrot.lane.b32.xlu0 %v526, 16
        %v532 = vpop.permute.xlu0 %531
        %v535 = vsel %vm201, %v525, %v530
        %v536 = vsel %vm201, %v526, %v532
        %v539 = vrot.slane %v535, 7
        %v540 = vrot.slane %v536, 7
        %v541 = vsel %vm206, %v539, %v540
        %v544 = vsel %vm206, 0.0, %v539
        %v545 = vsel %vm206, %v540, 0.0
        %548 = vrot.lane.b32.xlu0 %v544, 1
        %v549 = vpop.permute.xlu0 %548
        %550 = vrot.lane.b32.xlu0 %v541, 1
        %v551 = vpop.permute.xlu0 %550
        %552 = vrot.lane.b32.xlu0 %v545, 1
        %v553 = vpop.permute.xlu0 %552
        %v557 = vsel %vm225, 0.0, %v549
        %v558 = vsel %vm225, 0.0, %v551
        %v559 = vsel %vm225, 0.0, %v553
        %v560 = vsel %vm229, %v557, 0.0
        %v561 = vsel %vm229, %v558, 0.0
        %v562 = vsel %vm229, %v559, 0.0
        %v563 = vld [vmem:[%s1 + $0x12] sm:$0x1]
        %v564 = vperm.slane %v563, 0
        %v565 = vmul.f32 %v564, %v560
        %v566 = vmul.f32 %v564, %v561
        %v567 = vadd.f32 %v522, %v565
        %v568 = vadd.f32 %v523, %v566
        %v569 = vld [vmem:[%s1 + $0x13] sm:$0x1]
        %v570 = vperm.slane %v569, 0
        %573 = vrot.lane.b32.xlu0 %v560, 127
        %v574 = vpop.permute.xlu0 %573
        %575 = vrot.lane.b32.xlu0 %v561, 127
        %v576 = vpop.permute.xlu0 %575
        %v579 = vmul.f32 %v570, %v574
        %v580 = vmul.f32 %v570, %v576
        %v581 = vadd.f32 %v567, %v579
        %v582 = vadd.f32 %v568, %v580
        %v583 = vld [vmem:[%s1 + $0x14] sm:$0x1]
        %v584 = vperm.slane %v583, 0
        %585 = vrot.lane.b32.xlu0 %v560, 126
        %v586 = vpop.permute.xlu0 %585
        %587 = vrot.lane.b32.xlu0 %v561, 126
        %v588 = vpop.permute.xlu0 %587
        %v591 = vmul.f32 %v584, %v586
        %v592 = vmul.f32 %v584, %v588
        %v593 = vadd.f32 %v581, %v591
        %v594 = vadd.f32 %v582, %v592
        %v595 = vld [vmem:[%s1 + $0x15] sm:$0x1]
        %v596 = vperm.slane %v595, 0
        %v597 = vmul.f32 %v596, %v560
        %v598 = vmul.f32 %v596, %v561
        %v599 = vmul.f32 %v596, %v562
        %v603 = vrot.slane %v597, 1
        %v604 = vrot.slane %v598, 1
        %v605 = vsel %vm273, %v603, %v604
        %v606 = vrot.slane %v599, 1
        %v607 = vsel %vm273, %v604, %v606
        %v610 = vadd.f32 %v593, %v605
        %v611 = vadd.f32 %v594, %v607
        %v612 = vld [vmem:[%s1 + $0x16] sm:$0x1]
        %v613 = vperm.slane %v612, 0
        %v615 = vrot.slane %v560, 1
        %v616 = vrot.slane %v561, 1
        %v617 = vsel %vm273, %v615, %v616
        %v618 = vrot.slane %v562, 1
        %v619 = vsel %vm273, %v616, %v618
        %620 = vrot.lane.b32.xlu0 %v617, 127
        %v621 = vpop.permute.xlu0 %620
        %622 = vrot.lane.b32.xlu0 %v619, 127
        %v623 = vpop.permute.xlu0 %622
        %v626 = vmul.f32 %v613, %v621
        %v627 = vmul.f32 %v613, %v623
        %v628 = vadd.f32 %v610, %v626
        %v629 = vadd.f32 %v611, %v627
        %v630 = vld [vmem:[%s1 + $0x17] sm:$0x1]
        %v631 = vperm.slane %v630, 0
        %632 = vrot.lane.b32.xlu0 %v617, 126
        %v633 = vpop.permute.xlu0 %632
        %634 = vrot.lane.b32.xlu0 %v619, 126
        %v635 = vpop.permute.xlu0 %634
        %v638 = vmul.f32 %v631, %v633
        %v639 = vmul.f32 %v631, %v635
        %v640 = vadd.f32 %v628, %v638
        %v641 = vadd.f32 %v629, %v639
        %v642 = vld [vmem:[%s1 + $0x18] sm:$0x1]
        %v643 = vperm.slane %v642, 0
        %v644 = vmul.f32 %v643, %v560
        %v645 = vmul.f32 %v643, %v561
        %v646 = vmul.f32 %v643, %v562
        %v650 = vrot.slane %v644, 2
        %v651 = vrot.slane %v645, 2
        %v652 = vsel %vm321, %v650, %v651
        %v653 = vrot.slane %v646, 2
        %v654 = vsel %vm321, %v651, %v653
        %v657 = vadd.f32 %v640, %v652
        %v658 = vadd.f32 %v641, %v654
        %v659 = vld [vmem:[%s1 + $0x19] sm:$0x1]
        %v660 = vperm.slane %v659, 0
        %v661 = vrot.slane %v560, 2
        %v662 = vrot.slane %v561, 2
        %v663 = vsel %vm321, %v661, %v662
        %v664 = vrot.slane %v562, 2
        %v665 = vsel %vm321, %v662, %v664
        %666 = vrot.lane.b32.xlu0 %v663, 127
        %v667 = vpop.permute.xlu0 %666
        %668 = vrot.lane.b32.xlu0 %v665, 127
        %v669 = vpop.permute.xlu0 %668
        %v672 = vmul.f32 %v660, %v667
        %v673 = vmul.f32 %v660, %v669
        %v674 = vadd.f32 %v657, %v672
        %v675 = vadd.f32 %v658, %v673
        %v676 = vld [vmem:[%s1 + $0x1a] sm:$0x1]
        %v677 = vperm.slane %v676, 0
        %678 = vrot.lane.b32.xlu0 %v663, 126
        %v679 = vpop.permute.xlu0 %678
        %680 = vrot.lane.b32.xlu0 %v665, 126
        %v681 = vpop.permute.xlu0 %680
        %v684 = vmul.f32 %v677, %v679
        %v685 = vmul.f32 %v677, %v681
        %v686 = vadd.f32 %v674, %v684
        %v687 = vadd.f32 %v675, %v685
        %s688 = scalar_lea.vmem %s167, 48 [#allocation2]
        %v689 = vld [vmem:[%s688] sm:$0xff]
        %v690 = vld [vmem:[%s688 + $0x8] sm:$0xff]
        %693 = vrot.lane.b32.xlu0 %v689, 16
        %v694 = vpop.permute.xlu0 %693
        %695 = vrot.lane.b32.xlu0 %v690, 16
        %v696 = vpop.permute.xlu0 %695
        %v699 = vsel %vm201, %v689, %v694
        %v700 = vsel %vm201, %v690, %v696
        %v703 = vrot.slane %v699, 7
        %v704 = vrot.slane %v700, 7
        %v705 = vsel %vm206, %v703, %v704
        %v708 = vsel %vm206, 0.0, %v703
        %v709 = vsel %vm206, %v704, 0.0
        %712 = vrot.lane.b32.xlu0 %v708, 1
        %v713 = vpop.permute.xlu0 %712
        %714 = vrot.lane.b32.xlu0 %v705, 1
        %v715 = vpop.permute.xlu0 %714
        %716 = vrot.lane.b32.xlu0 %v709, 1
        %v717 = vpop.permute.xlu0 %716
        %v721 = vsel %vm225, 0.0, %v713
        %v722 = vsel %vm225, 0.0, %v715
        %v723 = vsel %vm225, 0.0, %v717
        %v724 = vsel %vm229, %v721, 0.0
        %v725 = vsel %vm229, %v722, 0.0
        %v726 = vsel %vm229, %v723, 0.0
        %v727 = vld [vmem:[%s1 + $0x1b] sm:$0x1]
        %v728 = vperm.slane %v727, 0
        %v729 = vmul.f32 %v728, %v724
        %v730 = vmul.f32 %v728, %v725
        %v731 = vadd.f32 %v686, %v729
        %v732 = vadd.f32 %v687, %v730
        %v733 = vld [vmem:[%s1 + $0x1c] sm:$0x1]
        %v734 = vperm.slane %v733, 0
        %737 = vrot.lane.b32.xlu0 %v724, 127
        %v738 = vpop.permute.xlu0 %737
        %739 = vrot.lane.b32.xlu0 %v725, 127
        %v740 = vpop.permute.xlu0 %739
        %v743 = vmul.f32 %v734, %v738
        %v744 = vmul.f32 %v734, %v740
        %v745 = vadd.f32 %v731, %v743
        %v746 = vadd.f32 %v732, %v744
        %v747 = vld [vmem:[%s1 + $0x1d] sm:$0x1]
        %v748 = vperm.slane %v747, 0
        %749 = vrot.lane.b32.xlu0 %v724, 126
        %v750 = vpop.permute.xlu0 %749
        %751 = vrot.lane.b32.xlu0 %v725, 126
        %v752 = vpop.permute.xlu0 %751
        %v755 = vmul.f32 %v748, %v750
        %v756 = vmul.f32 %v748, %v752
        %v757 = vadd.f32 %v745, %v755
        %v758 = vadd.f32 %v746, %v756
        %v759 = vld [vmem:[%s1 + $0x1e] sm:$0x1]
        %v760 = vperm.slane %v759, 0
        %v761 = vmul.f32 %v760, %v724
        %v762 = vmul.f32 %v760, %v725
        %v763 = vmul.f32 %v760, %v726
        %v767 = vrot.slane %v761, 1
        %v768 = vrot.slane %v762, 1
        %v769 = vsel %vm273, %v767, %v768
        %v770 = vrot.slane %v763, 1
        %v771 = vsel %vm273, %v768, %v770
        %v774 = vadd.f32 %v757, %v769
        %v775 = vadd.f32 %v758, %v771
        %v776 = vld [vmem:[%s1 + $0x1f] sm:$0x1]
        %v777 = vperm.slane %v776, 0
        %v779 = vrot.slane %v724, 1
        %v780 = vrot.slane %v725, 1
        %v781 = vsel %vm273, %v779, %v780
        %v782 = vrot.slane %v726, 1
        %v783 = vsel %vm273, %v780, %v782
        %784 = vrot.lane.b32.xlu0 %v781, 127
        %v785 = vpop.permute.xlu0 %784
        %786 = vrot.lane.b32.xlu0 %v783, 127
        %v787 = vpop.permute.xlu0 %786
        %v790 = vmul.f32 %v777, %v785
        %v791 = vmul.f32 %v777, %v787
        %v792 = vadd.f32 %v774, %v790
        %v793 = vadd.f32 %v775, %v791
        %v794 = vld [vmem:[%s1 + $0x20] sm:$0x1]
        %v795 = vperm.slane %v794, 0
        %796 = vrot.lane.b32.xlu0 %v781, 126
        %v797 = vpop.permute.xlu0 %796
        %798 = vrot.lane.b32.xlu0 %v783, 126
        %v799 = vpop.permute.xlu0 %798
        %v802 = vmul.f32 %v795, %v797
        %v803 = vmul.f32 %v795, %v799
        %v804 = vadd.f32 %v792, %v802
        %v805 = vadd.f32 %v793, %v803
        %v806 = vld [vmem:[%s1 + $0x21] sm:$0x1]
        %v807 = vperm.slane %v806, 0
        %v808 = vmul.f32 %v807, %v724
        %v809 = vmul.f32 %v807, %v725
        %v810 = vmul.f32 %v807, %v726
        %v814 = vrot.slane %v808, 2
        %v815 = vrot.slane %v809, 2
        %v816 = vsel %vm321, %v814, %v815
        %v817 = vrot.slane %v810, 2
        %v818 = vsel %vm321, %v815, %v817
        %v821 = vadd.f32 %v804, %v816
        %v822 = vadd.f32 %v805, %v818
        %v823 = vld [vmem:[%s1 + $0x22] sm:$0x1]
        %v824 = vperm.slane %v823, 0
        %v825 = vrot.slane %v724, 2
        %v826 = vrot.slane %v725, 2
        %v827 = vsel %vm321, %v825, %v826
        %v828 = vrot.slane %v726, 2
        %v829 = vsel %vm321, %v826, %v828
        %830 = vrot.lane.b32.xlu0 %v827, 127
        %v831 = vpop.permute.xlu0 %830
        %832 = vrot.lane.b32.xlu0 %v829, 127
        %v833 = vpop.permute.xlu0 %832
        %v836 = vmul.f32 %v824, %v831
        %v837 = vmul.f32 %v824, %v833
        %v838 = vadd.f32 %v821, %v836
        %v839 = vadd.f32 %v822, %v837
        %v840 = vld [vmem:[%s1 + $0x23] sm:$0x1]
        %v841 = vperm.slane %v840, 0
        %842 = vrot.lane.b32.xlu0 %v827, 126
        %v843 = vpop.permute.xlu0 %842
        %844 = vrot.lane.b32.xlu0 %v829, 126
        %v845 = vpop.permute.xlu0 %844
        %v848 = vmul.f32 %v841, %v843
        %v849 = vmul.f32 %v841, %v845
        %v850 = vadd.f32 %v838, %v848
        %v851 = vadd.f32 %v839, %v849
        %v852 = vld [vmem:[%s2] sm:$0x1]
        %v854 = vperm.slane %v852, 0
        %v856 = vadd.f32 %v850, %v854
        %v857 = vadd.f32 %v851, %v854
        %vm858 = vcmask 261120
        %859 = vst.msk [vmem:[%s190] sm:$0xff] %vm858, %v856
        %860 = vst.msk [vmem:[%s190 + $0x8] sm:$0xff] %vm858, %v857
        %s861 = sand.u32 %s96, 1
        %s862 = scalar_lea.sflag [#allocation4], %s861
        %s863 = sand.u32 %s96, 1
        %s864 = smul.addr %s863, 16
        %s865 = scalar_lea.vmem [#allocation5], %s864
        // Predicated region
        $region37: #{tpu_custom_call.1} parent=31 // pred_check
          %p866 = pneg %p106
        $region38: #{tpu_custom_call.1} parent=31 // pred_check_branch
          %868 = sbr.rel (%p866) target = $region40
        $region39: #{tpu_custom_call.1} parent=31 // pred_region
          %870 = vsyncadd %s862, 0
          %s871 = smul.addr %s20, 2
          %s872 = smul.addr %s871, 8
          %s873 = scalar_lea.hbm %s3, %s872
          %s874 = sshll.u32 %s865, 4
          %s875 = int_to_ptr.vmem [resolvable:$true] %s874
          %s876 = sshll.u32 %s873, 4
          %s877 = int_to_ptr.hbm [resolvable:$true] %s876
          %882 = dma.vmem_to_hbm [thread:$0]  %s875, 256, %s877, %s862, 128, 128, 8
        $region40: #{tpu_custom_call.1} parent=31 // pred_fallthru
          _
      $region32: #{tpu_custom_call.1} parent=5 // pred_fallthru
        _
      %p883 = scmp.le.s32.totalorder 2, %s15
      // Predicated region
      $region41: #{tpu_custom_call.1} parent=5 // pred_check
        %p884 = pneg %p883
      $region42: #{tpu_custom_call.1} parent=5 // pred_check_branch
        %886 = sbr.rel (%p884) target = $region44
      $region43: #{tpu_custom_call.1} parent=5 // pred_region
        %s887 = ssub.s32 %s15, 2
        // Predicated region
        $region45: #{tpu_custom_call.1} parent=43 // pred_check
          %p888 = pneg %p112
        $region46: #{tpu_custom_call.1} parent=43 // pred_check_branch
          %890 = sbr.rel (%p888) target = $region48
        $region47: #{tpu_custom_call.1} parent=43 // pred_region
          %s891 = sand.u32 %s97, 1
          %s892 = scalar_lea.sflag [#allocation4], %s891
          %s893 = sand.u32 %s97, 1
          %s894 = smul.addr %s893, 16
          %s895 = scalar_lea.vmem [#allocation5], %s894
          %897 = dma.done %s892, 256
        $region48: #{tpu_custom_call.1} parent=43 // pred_fallthru
          _
      $region44: #{tpu_custom_call.1} parent=5 // pred_fallthru
        _
    $region6: #{tpu_custom_call.1} parent=1 // loop_footer
      %s19 = sadd.s32 1, %s15
    $region7: #{tpu_custom_call.1} parent=1 // loop_footer_branch
      %14 = sbr.rel target = $region3
    $region8: #{tpu_custom_call.1} parent=1 // loop_exit
      _
    %898 = vsyncpa [#allocation3], 1
    %s899 = scalar_lea.sflag [#allocation3], 1
    %900 = vsyncpa %s899, 1
    %901 = vsyncpa [#allocation4], 1
    %s902 = scalar_lea.sflag [#allocation4], 1
    %903 = vsyncpa %s902, 1

</llo_original>
